<compile_context>
chip_gen: v5e
topology: v5e:2x2
jax: 0.10.0
libtpu: 0.0.40
codegen_flags: <defaults>
</compile_context>

<pallas_src>
import jax
import jax.numpy as jnp
from jax.experimental import pallas as pl
from jax.experimental.pallas import tpu as pltpu


def _round_up(x, m):
    return ((x + m - 1) // m) * m


def _split_and_pad_table(table):
    """Exact f32 -> bf16 (hi, mid, lo) split, padded to MXU/lane-friendly dims.

    Each residual has <= 8 significant mantissa bits, so hi + mid + lo == table
    exactly in f32.  A 0/1 one-hot matmul against each bf16 slab (f32
    accumulation) therefore reproduces the original f32 rows bit-exactly with
    three native bf16 MXU passes instead of the 6-pass Precision.HIGHEST
    emulation.  Runs ONCE at init (static weight prep, off the hot path).
    """
    table = table.astype(jnp.float32)
    V, H = table.shape
    hi = table.astype(jnp.bfloat16)
    r1 = table - hi.astype(jnp.float32)
    mid = r1.astype(jnp.bfloat16)
    r2 = r1 - mid.astype(jnp.float32)
    lo = r2.astype(jnp.bfloat16)
    split = jnp.stack([hi, mid, lo], axis=0)          # (3, V, H) bf16
    V_pad = _round_up(V, 128)                          # contraction dim: lane-dense
    H_pad = _round_up(H, 128)                          # output lanes: unmasked vst
    if (V_pad, H_pad) != (V, H):
        split = jnp.pad(split, ((0, 0), (0, V_pad - V), (0, H_pad - H)))
    return split


def _label_embed_kernel(labels_ref, table_ref, out_ref):
    """out[b, :] = sum_j table_split[j, labels[b], :]  (== f32 table row, exact)."""
    tb = out_ref.shape[0]
    v = table_ref.shape[1]
    labels = labels_ref[...]                                        # (TB, 1) int32
    class_ids = jax.lax.broadcasted_iota(jnp.int32, (tb, v), 1)     # (TB, V_pad)
    one_hot = (class_ids == labels).astype(jnp.bfloat16)            # exact 0/1, MXU lhs
    acc = jnp.dot(one_hot, table_ref[0], preferred_element_type=jnp.float32)
    acc = acc + jnp.dot(one_hot, table_ref[1], preferred_element_type=jnp.float32)
    acc = acc + jnp.dot(one_hot, table_ref[2], preferred_element_type=jnp.float32)
    out_ref[...] = acc.astype(out_ref.dtype)


def embedding_gather(labels, table_split, *, num_rows, out_features, tile_rows=256):
    """Pallas gather: out[b, :] = f32_table[labels[b], :] (table pre-split at init)."""
    # Clamp (matches jnp.take's default 'clip'); avoids silent all-zero rows
    # for out-of-range labels.
    labels = jnp.clip(labels.astype(jnp.int32), 0, num_rows - 1)
    (B,) = labels.shape
    _, V_pad, H_pad = table_split.shape

    # Batch tiling: sublane-aligned, balanced tiles; >= 2 tiles when B allows
    # so the "parallel" axis shards across both v7x TensorCores.
    B8 = _round_up(B, 8)
    n_tiles = max(pl.cdiv(B8, tile_rows), 2 if B8 >= 16 else 1)
    TB = _round_up(pl.cdiv(B8, n_tiles), 8)
    B_pad = n_tiles * TB

    labels_p = jnp.pad(labels, (0, B_pad - B)) if B_pad != B else labels
    labels_2d = labels_p.reshape(B_pad, 1)

    # Explicit VMEM budget: single-buffered table + double-buffered label /
    # output tiles + in-kernel intermediates (iota i32 + one-hot bf16 + f32 acc).
    table_bytes = 3 * V_pad * H_pad * 2
    io_bytes = 2 * TB * 4 + 2 * TB * H_pad * 4
    interm_bytes = TB * V_pad * (4 + 2) + TB * H_pad * 4
    need_bytes = table_bytes + io_bytes + interm_bytes + (2 << 20)   # + headroom
    vmem_limit_bytes = None
    if need_bytes > (16 << 20):          # above v5e's default scoped VMEM
        # Cap below v7x's 64 MiB physical VMEM so Mosaic keeps scratch headroom.
        vmem_limit_bytes = int(min(need_bytes, 48 << 20))
        # TODO(synk): if the table alone approaches this cap, tile V_pad as an
        # extra "arbitrary" grid axis with a pl.when(k==0)-initialized VMEM
        # accumulator instead of keeping the whole table resident.

    out = pl.pallas_call(
        _label_embed_kernel,
        out_shape=jax.ShapeDtypeStruct((B_pad, H_pad), jnp.float32),
        grid=(n_tiles,),
        in_specs=[
            # Labels for this batch tile (double-buffered, tiny).
            pl.BlockSpec((TB, 1), lambda i: (i, 0)),
            # Whole (pre-split, pre-padded) table: constant block index ->
            # fetched once; single-buffered so only one copy sits in VMEM.
            pl.BlockSpec((3, V_pad, H_pad), lambda i: (0, 0, 0),
                         pipeline_mode=pl.Buffered(1)),
        ],
        out_specs=pl.BlockSpec((TB, H_pad), lambda i: (i, 0)),
        compiler_params=pltpu.CompilerParams(
            dimension_semantics=("parallel",),
            vmem_limit_bytes=vmem_limit_bytes,
        ),
    )(labels_2d, table_split)

    if B_pad != B or H_pad != out_features:
        out = out[:B, :out_features]
    return out


class LabelEmbedder:
    """JAX/Pallas port of the PyTorch LabelEmbedder (DiT)."""

    def __init__(self, num_classes, hidden_size, dropout_prob, key):
        use_cfg_embedding = int(dropout_prob > 0)
        # nn.Embedding default init: weights ~ N(0, 1).
        self.embedding_table = jax.random.normal(
            key, (num_classes + use_cfg_embedding, hidden_size), dtype=jnp.float32
        )
        self.num_classes = num_classes
        self.hidden_size = hidden_size
        self.dropout_prob = dropout_prob
        # Static weight prep, hoisted off the per-call hot path.
        self.table_split = _split_and_pad_table(self.embedding_table)

    def token_drop(self, labels, rng=None, force_drop_ids=None):
        if force_drop_ids is None:
            if rng is None:
                raise ValueError("rng must be provided for random label dropout")
            drop_ids = (
                jax.random.uniform(rng, (labels.shape[0],)) < self.dropout_prob
            )
        else:
            drop_ids = force_drop_ids == 1
        return jnp.where(drop_ids, self.num_classes, labels)

    def __call__(self, labels, train, rng=None, force_drop_ids=None):
        use_dropout = self.dropout_prob > 0
        if (train and use_dropout) or (force_drop_ids is not None):
            labels = self.token_drop(labels, rng, force_drop_ids)
        return embedding_gather(
            labels,
            self.table_split,
            num_rows=self.embedding_table.shape[0],
            out_features=self.hidden_size,
        )


if __name__ == "__main__":
    key = jax.random.PRNGKey(0)
    k_table, k_labels, k_drop, k_table2, k_labels2 = jax.random.split(key, 5)

    num_classes = 10
    hidden_size = 128
    batch = 8
    dropout_prob = 0.1

    embedder = LabelEmbedder(num_classes, hidden_size, dropout_prob, k_table)
    table = embedder.embedding_table

    labels = jax.random.randint(k_labels, (batch,), 0, num_classes, dtype=jnp.int32)

    # Eval path (no dropout) — pure gather; exact f32 via the bf16x3 split.
    out_eval = jax.block_until_ready(embedder(labels, train=False))
    ref_eval = jnp.take(table, labels, axis=0)
    assert out_eval.shape == (batch, hidden_size)
    assert jnp.allclose(out_eval, ref_eval), "eval gather mismatch"

    # Train path with forced drop ids (deterministic CFG drop -> row num_classes).
    force_drop_ids = jnp.array([1, 0, 1, 0, 0, 0, 1, 0], dtype=jnp.int32)
    out_forced = jax.block_until_ready(
        embedder(labels, train=True, force_drop_ids=force_drop_ids)
    )
    dropped = jnp.where(force_drop_ids == 1, num_classes, labels)
    assert jnp.allclose(out_forced, jnp.take(table, dropped, axis=0))

    # Train path with random dropout: each row is either its label row or the CFG row.
    out_rng = jax.block_until_ready(embedder(labels, train=True, rng=k_drop))
    row_true = jnp.take(table, labels, axis=0)
    row_cfg = jnp.broadcast_to(table[num_classes], row_true.shape)
    per_row_ok = (
        jnp.all(jnp.isclose(out_rng, row_true), axis=-1)
        | jnp.all(jnp.isclose(out_rng, row_cfg), axis=-1)
    )
    assert bool(jnp.all(per_row_ok))

    # Ragged batch (B=20 -> two balanced grid tiles) + non-lane-aligned hidden
    # size (72 -> padded to 128 at init, sliced back after the kernel).
    embedder2 = LabelEmbedder(7, 72, 0.0, k_table2)
    labels2 = jax.random.randint(k_labels2, (20,), 0, 7, dtype=jnp.int32)
    out2 = jax.block_until_ready(embedder2(labels2, train=False))
    assert out2.shape == (20, 72)
    assert jnp.allclose(out2, jnp.take(embedder2.embedding_table, labels2, axis=0))

    print("KERNEL_OK")
</pallas_src>

<mosaic_0001>
module attributes {stable_mosaic.version = 11 : i64} {
  func.func @_label_embed_kernel(%arg0: i32, %arg1: memref<8x1xi32, #tpu.memory_space<vmem>>, %arg2: memref<3x128x128xbf16, #tpu.memory_space<vmem>>, %arg3: memref<8x128xf32, #tpu.memory_space<vmem>>) attributes {dimension_semantics = [#tpu.dimension_semantics<parallel>], iteration_bounds = array<i64: 1>, scalar_prefetch = 0 : i64, scratch_operands = 0 : i64, tpu.core_type = #tpu.core_type<tc>, window_params = [{transform_indices = @transform_0, window_bounds = array<i64: 8, 1>}, {pipeline_mode = #tpu.pipeline_mode<synchronous>, transform_indices = @transform_1, window_bounds = array<i64: 3, 128, 128>}, {transform_indices = @transform_2, window_bounds = array<i64: 8, 128>}]} {
    %c0 = arith.constant 0 : index
    %c0_0 = arith.constant 0 : index
    %0 = vector.load %arg1[%c0, %c0_0] : memref<8x1xi32, #tpu.memory_space<vmem>>, vector<8x1xi32>
    %1 = tpu.iota {dimensions = array<i32: 1>} : vector<8x128xi32>
    %2 = vector.broadcast %0 : vector<8x1xi32> to vector<8x128xi32>
    %3 = arith.cmpi eq, %1, %2 : vector<8x128xi32>
    %4 = arith.extui %3 : vector<8x128xi1> to vector<8x128xi32>
    %5 = arith.sitofp %4 : vector<8x128xi32> to vector<8x128xf32>
    %6 = arith.truncf %5 : vector<8x128xf32> to vector<8x128xbf16>
    %c0_1 = arith.constant 0 : index
    %c0_2 = arith.constant 0 : index
    %c0_3 = arith.constant 0 : index
    %7 = vector.load %arg2[%c0_1, %c0_2, %c0_3] : memref<3x128x128xbf16, #tpu.memory_space<vmem>>, vector<1x128x128xbf16>
    %8 = vector.shape_cast %7 : vector<1x128x128xbf16> to vector<128x128xbf16>
    %cst = arith.constant dense<0.000000e+00> : vector<8x128xf32>
    %9 = tpu.matmul %6, %8, %cst {dimension_numbers = #tpu.dot_dimension_numbers<[1], [0], [0], [1], [0, 0, 1, 1], [], []>} : vector<8x128xbf16>, vector<128x128xbf16>, vector<8x128xf32> -> vector<8x128xf32>
    %c1 = arith.constant 1 : index
    %c0_4 = arith.constant 0 : index
    %c0_5 = arith.constant 0 : index
    %10 = vector.load %arg2[%c1, %c0_4, %c0_5] : memref<3x128x128xbf16, #tpu.memory_space<vmem>>, vector<1x128x128xbf16>
    %11 = vector.shape_cast %10 : vector<1x128x128xbf16> to vector<128x128xbf16>
    %cst_6 = arith.constant dense<0.000000e+00> : vector<8x128xf32>
    %12 = tpu.matmul %6, %11, %cst_6 {dimension_numbers = #tpu.dot_dimension_numbers<[1], [0], [0], [1], [0, 0, 1, 1], [], []>} : vector<8x128xbf16>, vector<128x128xbf16>, vector<8x128xf32> -> vector<8x128xf32>
    %13 = arith.addf %9, %12 : vector<8x128xf32>
    %c2 = arith.constant 2 : index
    %c0_7 = arith.constant 0 : index
    %c0_8 = arith.constant 0 : index
    %14 = vector.load %arg2[%c2, %c0_7, %c0_8] : memref<3x128x128xbf16, #tpu.memory_space<vmem>>, vector<1x128x128xbf16>
    %15 = vector.shape_cast %14 : vector<1x128x128xbf16> to vector<128x128xbf16>
    %cst_9 = arith.constant dense<0.000000e+00> : vector<8x128xf32>
    %16 = tpu.matmul %6, %15, %cst_9 {dimension_numbers = #tpu.dot_dimension_numbers<[1], [0], [0], [1], [0, 0, 1, 1], [], []>} : vector<8x128xbf16>, vector<128x128xbf16>, vector<8x128xf32> -> vector<8x128xf32>
    %17 = arith.addf %13, %16 : vector<8x128xf32>
    %c0_10 = arith.constant 0 : index
    %c0_11 = arith.constant 0 : index
    %18 = vector.load %arg3[%c0_10, %c0_11] : memref<8x128xf32, #tpu.memory_space<vmem>>, vector<8x128xf32>
    tpu.vector_store %arg3[%c0_10, %c0_11], %17 {strides = array<i32>} : memref<8x128xf32, #tpu.memory_space<vmem>>, vector<8x128xf32>,
    return
  }
  func.func @transform_0(%arg0: i32) -> (i32, i32) {
    %c0_i32 = arith.constant 0 : i32
    %c0_i32_0 = arith.constant 0 : i32
    return %arg0, %c0_i32 : i32, i32
  }
  func.func @transform_1(%arg0: i32) -> (i32, i32, i32) {
    %c0_i32 = arith.constant 0 : i32
    %c0_i32_0 = arith.constant 0 : i32
    %c0_i32_1 = arith.constant 0 : i32
    %c0_i32_2 = arith.constant 0 : i32
    return %c0_i32, %c0_i32_0, %c0_i32_1 : i32, i32, i32
  }
  func.func @transform_2(%arg0: i32) -> (i32, i32) {
    %c0_i32 = arith.constant 0 : i32
    %c0_i32_0 = arith.constant 0 : i32
    return %arg0, %c0_i32 : i32, i32
  }
}

</mosaic_0001>

<llo_original>
// kernel: tpu_custom_call.1
$region0: #{tpu_custom_call.1}
  #allocation0 [shape = 'u32[]', space=smem, size = 0x4, offset = 0x4, fixed_abs, tag = 'smem constant byte address 0x4 - core index']
  #allocation1 [shape = 'u32[72,128]{1,0:T(1,128)}', space=vmem, size = 0x9000, scoped, tag = 'internal scratch']
  %s0 = inlined_call_operand.vmem [shape: s32[8,1], index: 0, kind: input, shape index: {}]
  %s1 = inlined_call_operand.hbm [shape: bf16[3,128,128], index: 1, kind: input, shape index: {}]
  %s2 = inlined_call_operand.hbm [shape: f32[8,128], index: 2, kind: output, shape index: {}]
  %s3 = sld [smem:[#allocation0]]
  $region22: #{tpu_custom_call.1} parent=0
    _
  %s5 = ssub.s32 1, %s3
  %s6 = scalar_select 0, %s5, %s3
  $region1: #{tpu_custom_call.1} parent=0
    #allocation2 [shape = 'u8[98304]{0}', space=vmem, size = 0x18000, scoped, tag = 'input window, operand 1, single buffered']
    #allocation3 [shape = 's32[1]{0}', space=sflag, size = 0x4, scoped, tag = 'scoped memory for tpu_custom_call.1']
    #allocation4 [shape = 's32[1]{0}', space=sflag, size = 0x4, scoped, tag = 'scoped memory for tpu_custom_call.1']
    #allocation5 [shape = 'u8[4096]{0}', space=vmem, size = 0x1000, scoped, tag = 'output window, operand 0, single buffered']
    %7 = vsyncpa [#allocation3], 0
    %8 = vsyncpa [#allocation4], 0
    // Predicated region
    $region2: #{tpu_custom_call.1} parent=1 // pred_check
      _
    $region3: #{tpu_custom_call.1} parent=1 // pred_check_branch
      %10 = sbr.rel (0) target = $region5
    $region4: #{tpu_custom_call.1} parent=1 // pred_region
      _
    $region5: #{tpu_custom_call.1} parent=1 // pred_fallthru
      _
    // Predicated region
    $region6: #{tpu_custom_call.1} parent=1 // pred_check
      _
    $region7: #{tpu_custom_call.1} parent=1 // pred_check_branch
      %12 = sbr.rel (0) target = $region9
    $region8: #{tpu_custom_call.1} parent=1 // pred_region
      %14 = vsyncadd [#allocation3], 0
      %s15 = sshll.u32 %s1, 4
      %s16 = int_to_ptr.hbm [resolvable:$true] %s15
      %s17 = sshll.u32 [#allocation2], 4
      %s18 = int_to_ptr.vmem [resolvable:$true] %s17
      %23 = dma.hbm_to_vmem [thread:$0]  %s16, 3072, %s18, [#allocation3], 64, 64, 4
    $region9: #{tpu_custom_call.1} parent=1 // pred_fallthru
      _
    // Predicated region
    $region10: #{tpu_custom_call.1} parent=1 // pred_check
      _
    $region11: #{tpu_custom_call.1} parent=1 // pred_check_branch
      %25 = sbr.rel (0) target = $region13
    $region12: #{tpu_custom_call.1} parent=1 // pred_region
      %27 = dma.done [#allocation3], 3072
    $region13: #{tpu_custom_call.1} parent=1 // pred_fallthru
      _
    %v28 = vld [vmem:[%s0] sm:$0xff]
    %v29 = vlaneseq
    %v30 = vand.u32 %v29, 127
    %31 = vset.pattern.permute.xlu0 0
    %32 = vperm.xlu0 %31, %v28
    %v33 = vpop.permute.xlu0 %32
    %vm34 = vcmp.eq.s32.totalorder %v30, %v33
    %v35 = vsel %vm34, 1, 0
    %v36 = vcvt.s32.f32 %v35
    %v37 = vpack.c.bf16 %v36, %v36
    %v38 = vld [vmem:[#allocation2] sm:$0xf]
    %v39 = vld [vmem:[#allocation2 + $0x4] sm:$0xf]
    %v40 = vld [vmem:[#allocation2 + $0x8] sm:$0xf]
    %v41 = vld [vmem:[#allocation2 + $0xc] sm:$0xf]
    %v42 = vld [vmem:[#allocation2 + $0x10] sm:$0xf]
    %v43 = vld [vmem:[#allocation2 + $0x14] sm:$0xf]
    %v44 = vld [vmem:[#allocation2 + $0x18] sm:$0xf]
    %v45 = vld [vmem:[#allocation2 + $0x1c] sm:$0xf]
    %v46 = vld [vmem:[#allocation2 + $0x20] sm:$0xf]
    %v47 = vld [vmem:[#allocation2 + $0x24] sm:$0xf]
    %v48 = vld [vmem:[#allocation2 + $0x28] sm:$0xf]
    %v49 = vld [vmem:[#allocation2 + $0x2c] sm:$0xf]
    %v50 = vld [vmem:[#allocation2 + $0x30] sm:$0xf]
    %v51 = vld [vmem:[#allocation2 + $0x34] sm:$0xf]
    %v52 = vld [vmem:[#allocation2 + $0x38] sm:$0xf]
    %v53 = vld [vmem:[#allocation2 + $0x3c] sm:$0xf]
    %s54 = scalar_lea.vmem [#allocation2], 64
    %v55 = vld [vmem:[%s54] sm:$0xf]
    %v56 = vld [vmem:[%s54 + $0x4] sm:$0xf]
    %v57 = vld [vmem:[%s54 + $0x8] sm:$0xf]
    %v58 = vld [vmem:[%s54 + $0xc] sm:$0xf]
    %v59 = vld [vmem:[%s54 + $0x10] sm:$0xf]
    %v60 = vld [vmem:[%s54 + $0x14] sm:$0xf]
    %v61 = vld [vmem:[%s54 + $0x18] sm:$0xf]
    %v62 = vld [vmem:[%s54 + $0x1c] sm:$0xf]
    %v63 = vld [vmem:[%s54 + $0x20] sm:$0xf]
    %v64 = vld [vmem:[%s54 + $0x24] sm:$0xf]
    %v65 = vld [vmem:[%s54 + $0x28] sm:$0xf]
    %v66 = vld [vmem:[%s54 + $0x2c] sm:$0xf]
    %v67 = vld [vmem:[%s54 + $0x30] sm:$0xf]
    %v68 = vld [vmem:[%s54 + $0x34] sm:$0xf]
    %v69 = vld [vmem:[%s54 + $0x38] sm:$0xf]
    %v70 = vld [vmem:[%s54 + $0x3c] sm:$0xf]
    %v87 = vunpack.c.l.b16 %v55
    %v88 = vunpack.c.l.b16 %v56
    %v89 = vunpack.c.l.b16 %v57
    %v90 = vunpack.c.l.b16 %v58
    %v91 = vunpack.c.l.b16 %v59
    %v92 = vunpack.c.l.b16 %v60
    %v93 = vunpack.c.l.b16 %v61
    %v94 = vunpack.c.l.b16 %v62
    %v95 = vunpack.c.l.b16 %v63
    %v96 = vunpack.c.l.b16 %v64
    %v97 = vunpack.c.l.b16 %v65
    %v98 = vunpack.c.l.b16 %v66
    %v99 = vunpack.c.l.b16 %v67
    %v100 = vunpack.c.l.b16 %v68
    %v101 = vunpack.c.l.b16 %v69
    %v102 = vunpack.c.l.b16 %v70
    %v103 = vpack.c.b16 %v88, %v87
    %v104 = vpack.c.b16 %v90, %v89
    %v105 = vpack.c.b16 %v92, %v91
    %v106 = vpack.c.b16 %v94, %v93
    %v107 = vpack.c.b16 %v96, %v95
    %v108 = vpack.c.b16 %v98, %v97
    %v109 = vpack.c.b16 %v100, %v99
    %v110 = vpack.c.b16 %v102, %v101
    %119 = vmatpush.bf16.msra.mxu0 %v110
    %120 = vmatpush.bf16.msra.mxu0 %v109
    %121 = vmatpush.bf16.msra.mxu0 %v108
    %122 = vmatpush.bf16.msra.mxu0 %v107
    %123 = vmatpush.bf16.msra.mxu0 %v106
    %124 = vmatpush.bf16.msra.mxu0 %v105
    %125 = vmatpush.bf16.msra.mxu0 %v104
    %126 = vmatpush.bf16.msra.mxu0 %v103
    %127 = vmatmul.bf16.gmra.mxu0 %v37
    %v128 = vpop.f32.mrf.mxu0
    %v129 = vadd.f32 0.0, %v128
    %v130 = vpop.f32.mrf.mxu0
    %131 = vdwg.mxu0
    %v148 = vunpack.c.l.b16 %v38
    %v149 = vunpack.c.l.b16 %v39
    %v150 = vunpack.c.l.b16 %v40
    %v151 = vunpack.c.l.b16 %v41
    %v152 = vunpack.c.l.b16 %v42
    %v153 = vunpack.c.l.b16 %v43
    %v154 = vunpack.c.l.b16 %v44
    %v155 = vunpack.c.l.b16 %v45
    %v156 = vunpack.c.l.b16 %v46
    %v157 = vunpack.c.l.b16 %v47
    %v158 = vunpack.c.l.b16 %v48
    %v159 = vunpack.c.l.b16 %v49
    %v160 = vunpack.c.l.b16 %v50
    %v161 = vunpack.c.l.b16 %v51
    %v162 = vunpack.c.l.b16 %v52
    %v163 = vunpack.c.l.b16 %v53
    %v164 = vpack.c.b16 %v149, %v148
    %v165 = vpack.c.b16 %v151, %v150
    %v166 = vpack.c.b16 %v153, %v152
    %v167 = vpack.c.b16 %v155, %v154
    %v168 = vpack.c.b16 %v157, %v156
    %v169 = vpack.c.b16 %v159, %v158
    %v170 = vpack.c.b16 %v161, %v160
    %v171 = vpack.c.b16 %v163, %v162
    %180 = vmatpush.bf16.msra.mxu0 %v171
    %181 = vmatpush.bf16.msra.mxu0 %v170
    %182 = vmatpush.bf16.msra.mxu0 %v169
    %183 = vmatpush.bf16.msra.mxu0 %v168
    %184 = vmatpush.bf16.msra.mxu0 %v167
    %185 = vmatpush.bf16.msra.mxu0 %v166
    %186 = vmatpush.bf16.msra.mxu0 %v165
    %187 = vmatpush.bf16.msra.mxu0 %v164
    %188 = vmatmul.bf16.gmra.mxu0 %v37
    %v189 = vpop.f32.mrf.mxu0
    %v190 = vadd.f32 %v129, %v189
    %v191 = vpop.f32.mrf.mxu0
    %192 = vdwg.mxu0
    %s193 = scalar_lea.vmem [#allocation2], 128
    %v194 = vld [vmem:[%s193] sm:$0xf]
    %v195 = vld [vmem:[%s193 + $0x4] sm:$0xf]
    %v196 = vld [vmem:[%s193 + $0x8] sm:$0xf]
    %v197 = vld [vmem:[%s193 + $0xc] sm:$0xf]
    %v198 = vld [vmem:[%s193 + $0x10] sm:$0xf]
    %v199 = vld [vmem:[%s193 + $0x14] sm:$0xf]
    %v200 = vld [vmem:[%s193 + $0x18] sm:$0xf]
    %v201 = vld [vmem:[%s193 + $0x1c] sm:$0xf]
    %v202 = vld [vmem:[%s193 + $0x20] sm:$0xf]
    %v203 = vld [vmem:[%s193 + $0x24] sm:$0xf]
    %v204 = vld [vmem:[%s193 + $0x28] sm:$0xf]
    %v205 = vld [vmem:[%s193 + $0x2c] sm:$0xf]
    %v206 = vld [vmem:[%s193 + $0x30] sm:$0xf]
    %v207 = vld [vmem:[%s193 + $0x34] sm:$0xf]
    %v208 = vld [vmem:[%s193 + $0x38] sm:$0xf]
    %v209 = vld [vmem:[%s193 + $0x3c] sm:$0xf]
    %v226 = vunpack.c.l.b16 %v194
    %v227 = vunpack.c.l.b16 %v195
    %v228 = vunpack.c.l.b16 %v196
    %v229 = vunpack.c.l.b16 %v197
    %v230 = vunpack.c.l.b16 %v198
    %v231 = vunpack.c.l.b16 %v199
    %v232 = vunpack.c.l.b16 %v200
    %v233 = vunpack.c.l.b16 %v201
    %v234 = vunpack.c.l.b16 %v202
    %v235 = vunpack.c.l.b16 %v203
    %v236 = vunpack.c.l.b16 %v204
    %v237 = vunpack.c.l.b16 %v205
    %v238 = vunpack.c.l.b16 %v206
    %v239 = vunpack.c.l.b16 %v207
    %v240 = vunpack.c.l.b16 %v208
    %v241 = vunpack.c.l.b16 %v209
    %v242 = vpack.c.b16 %v227, %v226
    %v243 = vpack.c.b16 %v229, %v228
    %v244 = vpack.c.b16 %v231, %v230
    %v245 = vpack.c.b16 %v233, %v232
    %v246 = vpack.c.b16 %v235, %v234
    %v247 = vpack.c.b16 %v237, %v236
    %v248 = vpack.c.b16 %v239, %v238
    %v249 = vpack.c.b16 %v241, %v240
    %258 = vmatpush.bf16.msra.mxu0 %v249
    %259 = vmatpush.bf16.msra.mxu0 %v248
    %260 = vmatpush.bf16.msra.mxu0 %v247
    %261 = vmatpush.bf16.msra.mxu0 %v246
    %262 = vmatpush.bf16.msra.mxu0 %v245
    %263 = vmatpush.bf16.msra.mxu0 %v244
    %264 = vmatpush.bf16.msra.mxu0 %v243
    %265 = vmatpush.bf16.msra.mxu0 %v242
    %266 = vmatmul.bf16.gmra.mxu0 %v37
    %v267 = vpop.f32.mrf.mxu0
    %v268 = vadd.f32 0.0, %v267
    %v269 = vpop.f32.mrf.mxu0
    %270 = vdwg.mxu0
    %v271 = vadd.f32 %v190, %v268
    %272 = vst [vmem:[#allocation5] sm:$0xff] %v271
    // Predicated region
    $region14: #{tpu_custom_call.1} parent=1 // pred_check
      _
    $region15: #{tpu_custom_call.1} parent=1 // pred_check_branch
      %274 = sbr.rel (0) target = $region17
    $region16: #{tpu_custom_call.1} parent=1 // pred_region
      %276 = vsyncadd [#allocation4], 0
      %s278 = sshll.u32 [#allocation5], 4
      %s279 = int_to_ptr.vmem [resolvable:$true] %s278
      %s280 = sshll.u32 %s2, 4
      %s281 = int_to_ptr.hbm [resolvable:$true] %s280
      %283 = dma.vmem_to_hbm [thread:$0]  %s279, 128, %s281, [#allocation4]
    $region17: #{tpu_custom_call.1} parent=1 // pred_fallthru
      _
    // Predicated region
    $region18: #{tpu_custom_call.1} parent=1 // pred_check
      _
    $region19: #{tpu_custom_call.1} parent=1 // pred_check_branch
      %285 = sbr.rel (0) target = $region21
    $region20: #{tpu_custom_call.1} parent=1 // pred_region
      %287 = dma.done [#allocation4], 128
    $region21: #{tpu_custom_call.1} parent=1 // pred_fallthru
      _
    %288 = vsyncpa [#allocation3], 1
    %289 = vsyncpa [#allocation4], 1

</llo_original>
